<compile_context>
chip_gen: v5e
topology: v5e:2x2
jax: 0.10.0
libtpu: 0.0.40
codegen_flags: <defaults>
</compile_context>

<pallas_src>
import functools

import jax
import jax.numpy as jnp
from jax import lax
from jax.experimental import pallas as pl
from jax.experimental.pallas import tpu as pltpu

LANES = 128
SUBLANES = 8
MAX_ROW_TILE = 4096  # 4096 rows x 128 lanes x 4 B = 2 MiB per f32 input tile


def _wbce_partial_kernel(p_ref, t_ref, w_ref, loss_out_ref, wsum_out_ref,
                         *, total_rows):
    i = pl.program_id(0)
    rt = p_ref.shape[0]  # static row-tile size

    p = p_ref[...].astype(jnp.float32)
    t = t_ref[...].astype(jnp.float32)
    w = w_ref[...].astype(jnp.float32)

    # Elementwise weighted BCE term (un-negated, matching the reference).
    # Note: like the reference, p==0 or p==1 yields -inf / NaN (no clamping).
    raw = jnp.log(p) * t + jnp.log(1.0 - p) * (1.0 - t)
    wl = raw * w

    def write(loss_vals, w_vals):
        # Reduce (rt, 128) -> (8, 128) by summing whole vregs elementwise
        # (VPU only, no cross-lane XLU work); final reduce happens in JAX.
        loss_out_ref[...] = loss_vals.reshape(-1, SUBLANES, LANES).sum(axis=0)
        wsum_out_ref[...] = w_vals.reshape(-1, SUBLANES, LANES).sum(axis=0)

    last = pl.num_programs(0) - 1

    @pl.when(i != last)
    def _():
        # Interior blocks are fully in-bounds: no mask math in steady state.
        write(wl, w)

    @pl.when(i == last)
    def _():
        # Only the (possibly partial) last block needs masking, and only at
        # row granularity: the <128-element host pad is benign (p=0.5, t=0,
        # w=0) so padded lanes already contribute exactly 0; this mask only
        # discards garbage rows read past the end of the array.
        valid_rows = total_rows - i * rt
        row = lax.broadcasted_iota(jnp.int32, (rt, LANES), 0)
        m = row < valid_rows
        write(jnp.where(m, wl, 0.0), jnp.where(m, w, 0.0))


def weighted_bce_loss_2d(probs, targets, weights):
    """probs/targets/weights: NCHW arrays of identical shape. Returns scalar f32.

    probs must be a floating dtype; targets/weights may be float, int8, or bool.
    """
    n = probs.size

    def prep(x):
        if x.dtype == jnp.bool_:
            x = x.astype(jnp.int8)
        return x.reshape(-1)

    p, t, w = prep(probs), prep(targets), prep(weights)

    # Tiny pad (<128 elements) only when N is not a multiple of 128 so we can
    # view the data as a lane-dense (rows, 128) slab. Pad values are benign:
    # p=0.5 keeps log() finite, w=0 zeroes the contribution to both sums.
    rem = n % LANES
    if rem:
        pad = LANES - rem
        p = jnp.pad(p, (0, pad), constant_values=0.5)
        t = jnp.pad(t, (0, pad))
        w = jnp.pad(w, (0, pad))

    rows = p.shape[0] // LANES
    p2 = p.reshape(rows, LANES)
    t2 = t.reshape(rows, LANES)
    w2 = w.reshape(rows, LANES)

    # Sub-32-bit dtypes pack along sublanes: second-minor block dim must be a
    # multiple of 8 (f32), 16 (bf16), 32 (int8).
    def _mult(x):
        return 8 * max(1, 4 // jnp.dtype(x.dtype).itemsize)

    mult = max(_mult(p2), _mult(t2), _mult(w2))
    row_tile = min(MAX_ROW_TILE, -(-rows // mult) * mult)
    row_tile = -(-row_tile // mult) * mult  # keep multiple after capping
    num_blocks = pl.cdiv(rows, row_tile)

    in_spec = pl.BlockSpec((row_tile, LANES), lambda i: (i, 0))
    out_spec = pl.BlockSpec((None, SUBLANES, LANES), lambda i: (i, 0, 0))

    itemsizes = sum(jnp.dtype(x.dtype).itemsize for x in (p2, t2, w2))
    in_bytes = sum(x.size * jnp.dtype(x.dtype).itemsize for x in (p2, t2, w2))
    out_bytes = 2 * num_blocks * SUBLANES * LANES * 4
    # 2 pipeline buffers per input tile + outputs + headroom; >= 32 MiB is safe
    # on every generation (v7x physical VMEM per TC is 64 MiB).
    vmem_limit = max(2 * row_tile * LANES * itemsizes + (4 << 20), 32 << 20)

    kernel = functools.partial(_wbce_partial_kernel, total_rows=rows)

    loss_parts, w_parts = pl.pallas_call(
        kernel,
        out_shape=(
            jax.ShapeDtypeStruct((num_blocks, SUBLANES, LANES), jnp.float32),
            jax.ShapeDtypeStruct((num_blocks, SUBLANES, LANES), jnp.float32),
        ),
        grid_spec=pltpu.PrefetchScalarGridSpec(
            num_scalar_prefetch=0,
            grid=(num_blocks,),
            in_specs=[in_spec, in_spec, in_spec],
            out_specs=[out_spec, out_spec],
        ),
        compiler_params=pltpu.CompilerParams(
            # No carried state -> fully parallel grid.
            dimension_semantics=("parallel",),
            vmem_limit_bytes=int(vmem_limit),
        ),
        cost_estimate=pl.CostEstimate(
            flops=8 * n,
            transcendentals=2 * n,
            bytes_accessed=in_bytes + out_bytes,
        ),
    )(p2, t2, w2)

    return jnp.sum(loss_parts) / jnp.sum(w_parts)


if __name__ == "__main__":
    key = jax.random.PRNGKey(0)
    k1, k2, k3 = jax.random.split(key, 3)

    B, C, H, W = 2, 4, 16, 16
    # probs in (0, 1), targets in {0, 1}, positive weights
    probs = jax.nn.sigmoid(jax.random.normal(k1, (B, C, H, W), jnp.float32))
    targets = (jax.random.uniform(k2, (B, C, H, W)) > 0.5).astype(jnp.float32)
    weights = jax.random.uniform(k3, (B, C, H, W), jnp.float32) + 0.1

    loss = weighted_bce_loss_2d(probs, targets, weights)
    loss = jax.block_until_ready(loss)

    # Pure-JAX reference check.
    pf, tf, wf = probs.reshape(-1), targets.reshape(-1), weights.reshape(-1)
    ref = jnp.sum((jnp.log(pf) * tf + jnp.log(1.0 - pf) * (1.0 - tf)) * wf) / jnp.sum(wf)
    assert jnp.allclose(loss, ref, rtol=1e-5, atol=1e-5), (loss, ref)

    print("KERNEL_OK")
</pallas_src>

<mosaic_0001>
module attributes {stable_mosaic.version = 11 : i64} {
  func.func @_wbce_partial_kernel(%arg0: i32, %arg1: memref<16x128xf32, #tpu.memory_space<vmem>>, %arg2: memref<16x128xf32, #tpu.memory_space<vmem>>, %arg3: memref<16x128xf32, #tpu.memory_space<vmem>>, %arg4: memref<1x8x128xf32, #tpu.memory_space<vmem>>, %arg5: memref<1x8x128xf32, #tpu.memory_space<vmem>>) attributes {dimension_semantics = [#tpu.dimension_semantics<parallel>], iteration_bounds = array<i64: 1>, scalar_prefetch = 0 : i64, scratch_operands = 0 : i64, tpu.core_type = #tpu.core_type<tc>, window_params = [{transform_indices = @transform_0, window_bounds = array<i64: 16, 128>}, {transform_indices = @transform_1, window_bounds = array<i64: 16, 128>}, {transform_indices = @transform_2, window_bounds = array<i64: 16, 128>}, {transform_indices = @transform_3, window_bounds = array<i64: 1, 8, 128>}, {transform_indices = @transform_4, window_bounds = array<i64: 1, 8, 128>}]} {
    %c0 = arith.constant 0 : index
    %c0_0 = arith.constant 0 : index
    %0 = vector.load %arg1[%c0, %c0_0] : memref<16x128xf32, #tpu.memory_space<vmem>>, vector<16x128xf32>
    %c0_1 = arith.constant 0 : index
    %c0_2 = arith.constant 0 : index
    %1 = vector.load %arg2[%c0_1, %c0_2] : memref<16x128xf32, #tpu.memory_space<vmem>>, vector<16x128xf32>
    %c0_3 = arith.constant 0 : index
    %c0_4 = arith.constant 0 : index
    %2 = vector.load %arg3[%c0_3, %c0_4] : memref<16x128xf32, #tpu.memory_space<vmem>>, vector<16x128xf32>
    %3 = math.log %0 : vector<16x128xf32>
    %4 = arith.mulf %3, %1 : vector<16x128xf32>
    %cst = arith.constant 1.000000e+00 : f32
    %5 = vector.broadcast %cst : f32 to vector<16x128xf32>
    %6 = arith.subf %5, %0 : vector<16x128xf32>
    %7 = math.log %6 : vector<16x128xf32>
    %cst_5 = arith.constant 1.000000e+00 : f32
    %8 = vector.broadcast %cst_5 : f32 to vector<16x128xf32>
    %9 = arith.subf %8, %1 : vector<16x128xf32>
    %10 = arith.mulf %7, %9 : vector<16x128xf32>
    %11 = arith.addf %4, %10 : vector<16x128xf32>
    %12 = arith.mulf %11, %2 : vector<16x128xf32>
    %c0_i32 = arith.constant 0 : i32
    %13 = arith.cmpi ne, %arg0, %c0_i32 : i32
    %14 = arith.extui %13 : i1 to i32
    %c0_i32_6 = arith.constant 0 : i32
    %15 = arith.cmpi ne, %14, %c0_i32_6 : i32
    scf.if %15 {
      %19 = vector.shape_cast %12 : vector<16x128xf32> to vector<2x8x128xf32>
      %cst_9 = arith.constant dense<0.000000e+00> : vector<8x128xf32>
      %20 = vector.multi_reduction <add>, %19, %cst_9 [0] : vector<2x8x128xf32> to vector<8x128xf32>
      %c0_10 = arith.constant 0 : index
      %c0_11 = arith.constant 0 : index
      %c0_12 = arith.constant 0 : index
      %21 = vector.load %arg4[%c0_10, %c0_11, %c0_12] : memref<1x8x128xf32, #tpu.memory_space<vmem>>, vector<1x8x128xf32>
      %22 = vector.shape_cast %21 : vector<1x8x128xf32> to vector<8x128xf32>
      %23 = vector.shape_cast %20 : vector<8x128xf32> to vector<1x8x128xf32>
      tpu.vector_store %arg4[%c0_10, %c0_11, %c0_12], %23 {strides = array<i32>} : memref<1x8x128xf32, #tpu.memory_space<vmem>>, vector<1x8x128xf32>,
      %24 = vector.shape_cast %2 : vector<16x128xf32> to vector<2x8x128xf32>
      %cst_13 = arith.constant dense<0.000000e+00> : vector<8x128xf32>
      %25 = vector.multi_reduction <add>, %24, %cst_13 [0] : vector<2x8x128xf32> to vector<8x128xf32>
      %c0_14 = arith.constant 0 : index
      %c0_15 = arith.constant 0 : index
      %c0_16 = arith.constant 0 : index
      %26 = vector.load %arg5[%c0_14, %c0_15, %c0_16] : memref<1x8x128xf32, #tpu.memory_space<vmem>>, vector<1x8x128xf32>
      %27 = vector.shape_cast %26 : vector<1x8x128xf32> to vector<8x128xf32>
      %28 = vector.shape_cast %25 : vector<8x128xf32> to vector<1x8x128xf32>
      tpu.vector_store %arg5[%c0_14, %c0_15, %c0_16], %28 {strides = array<i32>} : memref<1x8x128xf32, #tpu.memory_space<vmem>>, vector<1x8x128xf32>,
    } else {
    }
    %c0_i32_7 = arith.constant 0 : i32
    %16 = arith.cmpi eq, %arg0, %c0_i32_7 : i32
    %17 = arith.extui %16 : i1 to i32
    %c0_i32_8 = arith.constant 0 : i32
    %18 = arith.cmpi ne, %17, %c0_i32_8 : i32
    scf.if %18 {
      %c16_i32 = arith.constant 16 : i32
      %19 = arith.muli %arg0, %c16_i32 : i32
      %c16_i32_9 = arith.constant 16 : i32
      %20 = arith.subi %c16_i32_9, %19 : i32
      %21 = tpu.iota {dimensions = array<i32: 0>} : vector<16x128xi32>
      %22 = vector.broadcast %20 : i32 to vector<16x128xi32>
      %23 = arith.cmpi slt, %21, %22 : vector<16x128xi32>
      %cst_10 = arith.constant 0.000000e+00 : f32
      %24 = vector.broadcast %cst_10 : f32 to vector<16x128xf32>
      %25 = arith.select %23, %12, %24 : vector<16x128xi1>, vector<16x128xf32>
      %cst_11 = arith.constant 0.000000e+00 : f32
      %26 = vector.broadcast %cst_11 : f32 to vector<16x128xf32>
      %27 = arith.select %23, %2, %26 : vector<16x128xi1>, vector<16x128xf32>
      %28 = vector.shape_cast %25 : vector<16x128xf32> to vector<2x8x128xf32>
      %cst_12 = arith.constant dense<0.000000e+00> : vector<8x128xf32>
      %29 = vector.multi_reduction <add>, %28, %cst_12 [0] : vector<2x8x128xf32> to vector<8x128xf32>
      %c0_13 = arith.constant 0 : index
      %c0_14 = arith.constant 0 : index
      %c0_15 = arith.constant 0 : index
      %30 = vector.load %arg4[%c0_13, %c0_14, %c0_15] : memref<1x8x128xf32, #tpu.memory_space<vmem>>, vector<1x8x128xf32>
      %31 = vector.shape_cast %30 : vector<1x8x128xf32> to vector<8x128xf32>
      %32 = vector.shape_cast %29 : vector<8x128xf32> to vector<1x8x128xf32>
      tpu.vector_store %arg4[%c0_13, %c0_14, %c0_15], %32 {strides = array<i32>} : memref<1x8x128xf32, #tpu.memory_space<vmem>>, vector<1x8x128xf32>,
      %33 = vector.shape_cast %27 : vector<16x128xf32> to vector<2x8x128xf32>
      %cst_16 = arith.constant dense<0.000000e+00> : vector<8x128xf32>
      %34 = vector.multi_reduction <add>, %33, %cst_16 [0] : vector<2x8x128xf32> to vector<8x128xf32>
      %c0_17 = arith.constant 0 : index
      %c0_18 = arith.constant 0 : index
      %c0_19 = arith.constant 0 : index
      %35 = vector.load %arg5[%c0_17, %c0_18, %c0_19] : memref<1x8x128xf32, #tpu.memory_space<vmem>>, vector<1x8x128xf32>
      %36 = vector.shape_cast %35 : vector<1x8x128xf32> to vector<8x128xf32>
      %37 = vector.shape_cast %34 : vector<8x128xf32> to vector<1x8x128xf32>
      tpu.vector_store %arg5[%c0_17, %c0_18, %c0_19], %37 {strides = array<i32>} : memref<1x8x128xf32, #tpu.memory_space<vmem>>, vector<1x8x128xf32>,
    } else {
    }
    return
  }
  func.func @transform_0(%arg0: i32) -> (i32, i32) {
    %c0_i32 = arith.constant 0 : i32
    %c0_i32_0 = arith.constant 0 : i32
    return %arg0, %c0_i32 : i32, i32
  }
  func.func @transform_1(%arg0: i32) -> (i32, i32) {
    %c0_i32 = arith.constant 0 : i32
    %c0_i32_0 = arith.constant 0 : i32
    return %arg0, %c0_i32 : i32, i32
  }
  func.func @transform_2(%arg0: i32) -> (i32, i32) {
    %c0_i32 = arith.constant 0 : i32
    %c0_i32_0 = arith.constant 0 : i32
    return %arg0, %c0_i32 : i32, i32
  }
  func.func @transform_3(%arg0: i32) -> (i32, i32, i32) {
    %c0_i32 = arith.constant 0 : i32
    %c0_i32_0 = arith.constant 0 : i32
    %c0_i32_1 = arith.constant 0 : i32
    return %arg0, %c0_i32, %c0_i32_0 : i32, i32, i32
  }
  func.func @transform_4(%arg0: i32) -> (i32, i32, i32) {
    %c0_i32 = arith.constant 0 : i32
    %c0_i32_0 = arith.constant 0 : i32
    %c0_i32_1 = arith.constant 0 : i32
    return %arg0, %c0_i32, %c0_i32_0 : i32, i32, i32
  }
}

</mosaic_0001>

<llo_original>
// kernel: tpu_custom_call.1
$region0: #{tpu_custom_call.1}
  #allocation0 [shape = 'u32[]', space=smem, size = 0x4, offset = 0x4, fixed_abs, tag = 'smem constant byte address 0x4 - core index']
  #allocation1 [shape = 'u32[72,128]{1,0:T(1,128)}', space=vmem, size = 0x9000, scoped, tag = 'internal scratch']
  %s0 = inlined_call_operand.hbm [shape: f32[16,128], index: 0, kind: input, shape index: {}]
  %s1 = inlined_call_operand.hbm [shape: f32[16,128], index: 1, kind: input, shape index: {}]
  %s2 = inlined_call_operand.hbm [shape: f32[16,128], index: 2, kind: input, shape index: {}]
  %s3 = inlined_call_operand.hbm [shape: f32[1,8,128], index: 3, kind: output, shape index: {0}]
  %s4 = inlined_call_operand.hbm [shape: f32[1,8,128], index: 4, kind: output, shape index: {1}]
  %5 = xla_tuple %s3, %s4
  %s6 = sld [smem:[#allocation0]]
  $region50: #{tpu_custom_call.1} parent=0
    _
  %s8 = ssub.s32 1, %s6
  %s9 = scalar_select 0, %s8, %s6
  $region1: #{tpu_custom_call.1} parent=0
    #allocation2 [shape = 'u8[8192]{0}', space=vmem, size = 0x2000, scoped, tag = 'input window, operand 0, single buffered']
    #allocation3 [shape = 's32[1]{0}', space=sflag, size = 0x4, scoped, tag = 'scoped memory for tpu_custom_call.1']
    #allocation4 [shape = 's32[1]{0}', space=sflag, size = 0x4, scoped, tag = 'scoped memory for tpu_custom_call.1']
    #allocation5 [shape = 'u8[8192]{0}', space=vmem, size = 0x2000, scoped, tag = 'input window, operand 1, single buffered']
    #allocation6 [shape = 's32[1]{0}', space=sflag, size = 0x4, scoped, tag = 'scoped memory for tpu_custom_call.1']
    #allocation7 [shape = 'u8[8192]{0}', space=vmem, size = 0x2000, scoped, tag = 'input window, operand 2, single buffered']
    #allocation8 [shape = 'u8[4096]{0}', space=vmem, size = 0x1000, scoped, tag = 'output window, operand 0, single buffered']
    #allocation9 [shape = 'u8[4096]{0}', space=vmem, size = 0x1000, scoped, tag = 'output window, operand 1, single buffered']
    #allocation10 [shape = 's32[1]{0}', space=sflag, size = 0x4, scoped, tag = 'scoped memory for tpu_custom_call.1']
    %10 = vsyncpa [#allocation3], 0
    %11 = vsyncpa [#allocation6], 0
    %12 = vsyncpa [#allocation4], 0
    %13 = vsyncpa [#allocation10], 0
    // Predicated region
    $region2: #{tpu_custom_call.1} parent=1 // pred_check
      _
    $region3: #{tpu_custom_call.1} parent=1 // pred_check_branch
      %15 = sbr.rel (0) target = $region5
    $region4: #{tpu_custom_call.1} parent=1 // pred_region
      %17 = vsyncadd [#allocation3], 0
      %s18 = sshll.u32 %s0, 4
      %s19 = int_to_ptr.hbm [resolvable:$true] %s18
      %s20 = sshll.u32 [#allocation2], 4
      %s21 = int_to_ptr.vmem [resolvable:$true] %s20
      %26 = dma.hbm_to_vmem [thread:$0]  %s19, 256, %s21, [#allocation3], 128, 128, 8
    $region5: #{tpu_custom_call.1} parent=1 // pred_fallthru
      _
    // Predicated region
    $region6: #{tpu_custom_call.1} parent=1 // pred_check
      _
    $region7: #{tpu_custom_call.1} parent=1 // pred_check_branch
      %28 = sbr.rel (0) target = $region9
    $region8: #{tpu_custom_call.1} parent=1 // pred_region
      %30 = vsyncadd [#allocation6], 0
      %s31 = sshll.u32 %s1, 4
      %s32 = int_to_ptr.hbm [resolvable:$true] %s31
      %s33 = sshll.u32 [#allocation5], 4
      %s34 = int_to_ptr.vmem [resolvable:$true] %s33
      %39 = dma.hbm_to_vmem [thread:$0]  %s32, 256, %s34, [#allocation6], 128, 128, 8
    $region9: #{tpu_custom_call.1} parent=1 // pred_fallthru
      _
    // Predicated region
    $region10: #{tpu_custom_call.1} parent=1 // pred_check
      _
    $region11: #{tpu_custom_call.1} parent=1 // pred_check_branch
      %41 = sbr.rel (0) target = $region13
    $region12: #{tpu_custom_call.1} parent=1 // pred_region
      %43 = vsyncadd [#allocation6], 0
      %s44 = sshll.u32 %s2, 4
      %s45 = int_to_ptr.hbm [resolvable:$true] %s44
      %s46 = sshll.u32 [#allocation7], 4
      %s47 = int_to_ptr.vmem [resolvable:$true] %s46
      %52 = dma.hbm_to_vmem [thread:$0]  %s45, 256, %s47, [#allocation6], 128, 128, 8
    $region13: #{tpu_custom_call.1} parent=1 // pred_fallthru
      _
    // Predicated region
    $region14: #{tpu_custom_call.1} parent=1 // pred_check
      _
    $region15: #{tpu_custom_call.1} parent=1 // pred_check_branch
      %54 = sbr.rel (0) target = $region17
    $region16: #{tpu_custom_call.1} parent=1 // pred_region
      %56 = dma.done [#allocation3], 256
    $region17: #{tpu_custom_call.1} parent=1 // pred_fallthru
      _
    // Predicated region
    $region18: #{tpu_custom_call.1} parent=1 // pred_check
      _
    $region19: #{tpu_custom_call.1} parent=1 // pred_check_branch
      %58 = sbr.rel (0) target = $region21
    $region20: #{tpu_custom_call.1} parent=1 // pred_region
      %60 = dma.done [#allocation6], 256
    $region21: #{tpu_custom_call.1} parent=1 // pred_fallthru
      _
    // Predicated region
    $region22: #{tpu_custom_call.1} parent=1 // pred_check
      _
    $region23: #{tpu_custom_call.1} parent=1 // pred_check_branch
      %62 = sbr.rel (0) target = $region25
    $region24: #{tpu_custom_call.1} parent=1 // pred_region
      %64 = dma.done [#allocation6], 256
    $region25: #{tpu_custom_call.1} parent=1 // pred_fallthru
      _
    %v65 = vld [vmem:[#allocation2] sm:$0xff]
    %v66 = vld [vmem:[#allocation2 + $0x8] sm:$0xff]
    %v67 = vld [vmem:[#allocation5] sm:$0xff]
    %v68 = vld [vmem:[#allocation5 + $0x8] sm:$0xff]
    %v69 = vld [vmem:[#allocation7] sm:$0xff]
    %v70 = vld [vmem:[#allocation7 + $0x8] sm:$0xff]
    %v71 = vlog2.pop %v65
    %v72 = vmul.f32 %v71, 0.6931472
    %v73 = vlog2.pop %v66
    %v74 = vmul.f32 %v73, 0.6931472
    %v75 = vmul.f32 %v72, %v67
    %v76 = vmul.f32 %v74, %v68
    %v77 = vsub.f32 1.0, %v65
    %v78 = vsub.f32 1.0, %v66
    %v79 = vlog2.pop %v77
    %v80 = vmul.f32 %v79, 0.6931472
    %v81 = vlog2.pop %v78
    %v82 = vmul.f32 %v81, 0.6931472
    %v83 = vsub.f32 1.0, %v67
    %v84 = vsub.f32 1.0, %v68
    %v85 = vmul.f32 %v80, %v83
    %v86 = vmul.f32 %v82, %v84
    %v87 = vadd.f32 %v75, %v85
    %v88 = vadd.f32 %v76, %v86
    %v89 = vmul.f32 %v87, %v69
    %v90 = vmul.f32 %v88, %v70
    %p91 = scmp.ne.s32.totalorder 0, 0
    // Predicated region
    $region26: #{tpu_custom_call.1} parent=1 // pred_check
      %p92 = pneg %p91
    $region27: #{tpu_custom_call.1} parent=1 // pred_check_branch
      %94 = sbr.rel (%p92) target = $region29
    $region28: #{tpu_custom_call.1} parent=1 // pred_region
      %v95 = vadd.f32 %v89, %v90
      %96 = vst [vmem:[#allocation8] sm:$0xff] %v95
      %v97 = vadd.f32 %v69, %v70
      %98 = vst [vmem:[#allocation9] sm:$0xff] %v97
    $region29: #{tpu_custom_call.1} parent=1 // pred_fallthru
      _
    %p99 = scmp.eq.s32.totalorder 0, 0
    // Predicated region
    $region30: #{tpu_custom_call.1} parent=1 // pred_check
      %p100 = pneg %p99
    $region31: #{tpu_custom_call.1} parent=1 // pred_check_branch
      %102 = sbr.rel (%p100) target = $region33
    $region32: #{tpu_custom_call.1} parent=1 // pred_region
      %s103 = smul.u32 0, 16
      %s104 = ssub.s32 16, %s103
      %v105 = vlaneseq
      %v106 = vshrl.u32 %v105, 7
      %v107 = vadd.s32 %v106, 8
      %v108 = vstv %s104
      %vm109 = vcmp.lt.s32.totalorder %v106, %v108
      %vm110 = vcmp.lt.s32.totalorder %v107, %v108
      %v111 = vsel %vm109, %v89, 0.0
      %v112 = vsel %vm110, %v90, 0.0
      %v113 = vsel %vm109, %v69, 0.0
      %v114 = vsel %vm110, %v70, 0.0
      %v115 = vadd.f32 %v111, %v112
      %116 = vst [vmem:[#allocation8] sm:$0xff] %v115
      %v117 = vadd.f32 %v113, %v114
      %118 = vst [vmem:[#allocation9] sm:$0xff] %v117
    $region33: #{tpu_custom_call.1} parent=1 // pred_fallthru
      _
    // Predicated region
    $region34: #{tpu_custom_call.1} parent=1 // pred_check
      _
    $region35: #{tpu_custom_call.1} parent=1 // pred_check_branch
      %120 = sbr.rel (0) target = $region37
    $region36: #{tpu_custom_call.1} parent=1 // pred_region
      %122 = vsyncadd [#allocation4], 0
      %s124 = sshll.u32 [#allocation8], 4
      %s125 = int_to_ptr.vmem [resolvable:$true] %s124
      %s126 = sshll.u32 %s3, 4
      %s127 = int_to_ptr.hbm [resolvable:$true] %s126
      %129 = dma.vmem_to_hbm [thread:$0]  %s125, 128, %s127, [#allocation4]
    $region37: #{tpu_custom_call.1} parent=1 // pred_fallthru
      _
    // Predicated region
    $region38: #{tpu_custom_call.1} parent=1 // pred_check
      _
    $region39: #{tpu_custom_call.1} parent=1 // pred_check_branch
      %131 = sbr.rel (0) target = $region41
    $region40: #{tpu_custom_call.1} parent=1 // pred_region
      %133 = vsyncadd [#allocation10], 0
      %s135 = sshll.u32 [#allocation9], 4
      %s136 = int_to_ptr.vmem [resolvable:$true] %s135
      %s137 = sshll.u32 %s4, 4
      %s138 = int_to_ptr.hbm [resolvable:$true] %s137
      %140 = dma.vmem_to_hbm [thread:$0]  %s136, 128, %s138, [#allocation10]
    $region41: #{tpu_custom_call.1} parent=1 // pred_fallthru
      _
    // Predicated region
    $region42: #{tpu_custom_call.1} parent=1 // pred_check
      _
    $region43: #{tpu_custom_call.1} parent=1 // pred_check_branch
      %142 = sbr.rel (0) target = $region45
    $region44: #{tpu_custom_call.1} parent=1 // pred_region
      %144 = dma.done [#allocation4], 128
    $region45: #{tpu_custom_call.1} parent=1 // pred_fallthru
      _
    // Predicated region
    $region46: #{tpu_custom_call.1} parent=1 // pred_check
      _
    $region47: #{tpu_custom_call.1} parent=1 // pred_check_branch
      %146 = sbr.rel (0) target = $region49
    $region48: #{tpu_custom_call.1} parent=1 // pred_region
      %148 = dma.done [#allocation10], 128
    $region49: #{tpu_custom_call.1} parent=1 // pred_fallthru
      _
    %149 = vsyncpa [#allocation3], 1
    %150 = vsyncpa [#allocation6], 1
    %151 = vsyncpa [#allocation4], 1
    %152 = vsyncpa [#allocation10], 1

</llo_original>
